<compile_context>
chip_gen: v7x
topology: tpu7x:2x2x1
jax: 0.10.0
libtpu: 0.0.40
codegen_flags: <defaults>
</compile_context>

<pallas_src>
import jax
import jax.numpy as jnp
import numpy as np
from jax.experimental import pallas as pl
from jax.experimental.pallas import tpu as pltpu

_LANE = 128


def _round_up(v: int, m: int) -> int:
    return (v + m - 1) // m * m


def _vmem_budgets():
    """Returns (vmem_limit_bytes, padded_tile_budget_bytes), generation-aware."""
    phys = None
    try:
        info = pltpu.get_tpu_info()
        phys = getattr(info, "vmem_capacity_bytes", None)
    except Exception:
        phys = None
    if phys is None:
        phys = 128 * 1024 * 1024  # assume v5e/v6e-class if query unavailable
    if phys >= 128 * 1024 * 1024:
        # v5e / v6e: 128 MiB physical VMEM. Lift the scoped default (16/32 MiB)
        # and give the double-buffered in+out tiles a ~44 MiB padded budget.
        return 64 * 1024 * 1024, 44 * 1024 * 1024
    # v7x: 64 MiB physical per TensorCore -> stay comfortably under it.
    return 40 * 1024 * 1024, 26 * 1024 * 1024


def _append_log_std_kernel(x_ref, log_std_ref, o_ref):
    # x_ref:       (TILE_B, D)       VMEM (batch-tiled)
    # log_std_ref: (1, dim)          VMEM (constant block, stays resident)
    # o_ref:       (TILE_B, D + dim) VMEM
    tile_b, D = x_ref.shape
    dim = log_std_ref.shape[-1]
    bcast = jnp.broadcast_to(log_std_ref[...], (tile_b, dim))
    if D % _LANE == 0:
        # Lane-aligned junction: one unmasked bulk store for x plus a tiny
        # masked tail store for log_std -- no concatenate temp in VMEM.
        o_ref[:, :D] = x_ref[...]
        o_ref[:, D:] = bcast
    else:
        # Unaligned D: build the full row and issue a single full-block store.
        o_ref[...] = jnp.concatenate([x_ref[...], bcast], axis=-1)


def _pick_tile_b(B: int, D: int, dim: int, dtype, budget_bytes: int) -> int:
    """Largest batch tile whose *layout-padded*, double-buffered in+out
    footprint fits the budget; always a multiple of the sublane count (or == B),
    and split into >= 2 grid steps whenever B is splittable."""
    itemsize = jnp.dtype(dtype).itemsize
    sublane = max(8, 32 // itemsize)          # 8 for f32, 16 for bf16, ...
    lanes_in = _round_up(D, _LANE)
    lanes_out = _round_up(D + dim, _LANE)
    bytes_per_row = 2 * (lanes_in + lanes_out) * itemsize  # 2x double buffer
    cap = budget_bytes // max(bytes_per_row, 1)
    cap = max(sublane, (cap // sublane) * sublane)
    if B <= sublane:
        return B  # cannot split further; single full-batch block is legal
    if B <= cap:
        # >= 2 grid steps: lets v7x shard the batch across both TensorCores and
        # gives the auto-pipeline read/write DMA something to overlap with.
        return min(cap, _round_up(pl.cdiv(B, 2), sublane))
    # B > cap: split as evenly as possible so the last block is not nearly empty.
    n_blocks = pl.cdiv(B, cap)
    return min(cap, _round_up(pl.cdiv(B, n_blocks), sublane))


def append_log_std(x: jax.Array, log_std: jax.Array, *, tile_b=None) -> jax.Array:
    """Pallas equivalent of AppendLogStd.forward.

    x:       [B, D]
    log_std: [dim]
    returns: [B, D + dim]
    """
    assert x.ndim == 2, "x must be [batch, features]"
    B, D = x.shape
    dim = log_std.shape[0]
    # TODO(synk): PyTorch's cat promotes to the param's float32 if x is bf16;
    # here log_std is cast down to x.dtype (only matters under mixed precision).
    log_std_2d = log_std.reshape(1, dim).astype(x.dtype)
    itemsize = jnp.dtype(x.dtype).itemsize

    # Tiny problems: a fused XLA concat beats kernel-launch + padded-tile cost.
    if tile_b is None and B * (D + dim) < 1024:
        return jnp.concatenate([x, jnp.broadcast_to(log_std_2d, (B, dim))], axis=-1)

    vmem_limit, tile_budget = _vmem_budgets()
    if tile_b is None:
        tile_b = _pick_tile_b(B, D, dim, x.dtype, tile_budget)
    assert tile_b == B or tile_b % 8 == 0, (
        "tile_b must equal B or be a multiple of 8 (TPU sublane tiling)")

    grid = (pl.cdiv(B, tile_b),)
    out_shape = jax.ShapeDtypeStruct((B, D + dim), x.dtype)

    cost = pl.CostEstimate(
        flops=0,
        transcendentals=0,
        bytes_accessed=(B * D + dim + B * (D + dim)) * itemsize,
    )

    return pl.pallas_call(
        _append_log_std_kernel,
        out_shape=out_shape,
        grid=grid,
        in_specs=[
            pl.BlockSpec((tile_b, D), lambda i: (i, 0)),   # batch-tiled x
            pl.BlockSpec((1, dim), lambda i: (0, 0)),      # resident log_std
        ],
        out_specs=pl.BlockSpec((tile_b, D + dim), lambda i: (i, 0)),
        compiler_params=pltpu.CompilerParams(
            # "parallel" lets v7x split the >=2 batch blocks across its 2 TCs.
            dimension_semantics=("parallel",),
            vmem_limit_bytes=vmem_limit,
        ),
        cost_estimate=cost,
    )(x, log_std_2d)


class AppendLogStdJax:
    """Mirror of the PyTorch module (parameter init + forward)."""

    def __init__(self, init_log_std: float, dim: int, fixed_grad: bool = True):
        # Same init as torch: [init_log_std] * dim, float32.
        self.log_std = jnp.full((dim,), init_log_std, dtype=jnp.float32)
        # TODO(synk): fixed_grad only toggles requires_grad (training); no forward effect.

    def set_value(self, val: float):
        self.log_std = jnp.full(self.log_std.shape, np.log(val), dtype=jnp.float32)

    def __call__(self, x: jax.Array, **kwargs) -> jax.Array:
        return append_log_std(x, self.log_std, **kwargs)


if __name__ == "__main__":
    key = jax.random.PRNGKey(0)
    init_log_std = -1.0

    # 1) Lane-aligned feature dim: two-store path; auto tiler picks >= 2 steps.
    batch, feat, dim = 16, 128, 4
    x = jax.random.normal(key, (batch, feat), dtype=jnp.float32)
    module = AppendLogStdJax(init_log_std, dim, fixed_grad=True)
    out = jax.block_until_ready(module(x))
    ref = jnp.concatenate(
        [x, jnp.broadcast_to(module.log_std[None, :], (batch, dim))], axis=-1)
    assert out.shape == (batch, feat + dim)
    np.testing.assert_allclose(np.asarray(out), np.asarray(ref), rtol=0, atol=0)

    # 2) Explicit tile_b (2-step grid, same kernel path) matches too.
    out_t = jax.block_until_ready(module(x, tile_b=8))
    np.testing.assert_allclose(np.asarray(out_t), np.asarray(ref), rtol=0, atol=0)

    # 3) Ragged batch (B not a multiple of the chosen tile) with aligned features.
    xb = jax.random.normal(jax.random.PRNGKey(1), (20, 128), dtype=jnp.float32)
    outb = jax.block_until_ready(append_log_std(xb, module.log_std))
    refb = jnp.concatenate(
        [xb, jnp.broadcast_to(module.log_std[None, :], (20, dim))], axis=-1)
    np.testing.assert_allclose(np.asarray(outb), np.asarray(refb), rtol=0, atol=0)

    # 4) Unaligned feature dim (D % 128 != 0): concat + full-block-store path.
    m2 = AppendLogStdJax(0.5, 4)
    x2 = jax.random.normal(jax.random.PRNGKey(2), (16, 96), dtype=jnp.float32)
    out2 = jax.block_until_ready(m2(x2))
    ref2 = jnp.concatenate(
        [x2, jnp.broadcast_to(m2.log_std[None, :], (16, 4))], axis=-1)
    np.testing.assert_allclose(np.asarray(out2), np.asarray(ref2), rtol=0, atol=0)

    # 5) set_value mirrors torch (stores np.log(val)).
    m2.set_value(0.25)
    assert np.allclose(np.asarray(m2.log_std), np.log(0.25))

    print("KERNEL_OK")
</pallas_src>

<mosaic_0001>
module attributes {stable_mosaic.version = 11 : i64} {
  func.func @_append_log_std_kernel(%arg0: i32, %arg1: memref<8x128xf32, #tpu.memory_space<vmem>>, %arg2: memref<1x4xf32, #tpu.memory_space<vmem>>, %arg3: memref<8x132xf32, #tpu.memory_space<vmem>>) attributes {dimension_semantics = [#tpu.dimension_semantics<parallel>], iteration_bounds = array<i64: 2>, scalar_prefetch = 0 : i64, scratch_operands = 0 : i64, tpu.core_type = #tpu.core_type<tc>, window_params = [{transform_indices = @transform_0, window_bounds = array<i64: 8, 128>}, {pipeline_mode = #tpu.pipeline_mode<synchronous>, transform_indices = @transform_1, window_bounds = array<i64: 1, 4>}, {transform_indices = @transform_2, window_bounds = array<i64: 8, 132>}]} {
    %c0 = arith.constant 0 : index
    %c0_0 = arith.constant 0 : index
    %0 = vector.load %arg2[%c0, %c0_0] : memref<1x4xf32, #tpu.memory_space<vmem>>, vector<1x4xf32>
    %1 = vector.shape_cast %0 : vector<1x4xf32> to vector<1x4xf32>
    %2 = vector.broadcast %1 : vector<1x4xf32> to vector<8x4xf32>
    %c0_1 = arith.constant 0 : index
    %c0_2 = arith.constant 0 : index
    %3 = vector.load %arg1[%c0_1, %c0_2] : memref<8x128xf32, #tpu.memory_space<vmem>>, vector<8x128xf32>
    %c0_3 = arith.constant 0 : index
    %c0_4 = arith.constant 0 : index
    %4 = vector.load %arg3[%c0_3, %c0_4] : memref<8x132xf32, #tpu.memory_space<vmem>>, vector<8x128xf32>
    tpu.vector_store %arg3[%c0_3, %c0_4], %3 {strides = array<i32>} : memref<8x132xf32, #tpu.memory_space<vmem>>, vector<8x128xf32>,
    %c0_5 = arith.constant 0 : index
    %c128 = arith.constant 128 : index
    %5 = vector.load %arg3[%c0_5, %c128] : memref<8x132xf32, #tpu.memory_space<vmem>>, vector<8x4xf32>
    tpu.vector_store %arg3[%c0_5, %c128], %2 {strides = array<i32>} : memref<8x132xf32, #tpu.memory_space<vmem>>, vector<8x4xf32>,
    return
  }
  func.func @transform_0(%arg0: i32) -> (i32, i32) {
    %c0_i32 = arith.constant 0 : i32
    %c0_i32_0 = arith.constant 0 : i32
    return %arg0, %c0_i32 : i32, i32
  }
  func.func @transform_1(%arg0: i32) -> (i32, i32) {
    %c0_i32 = arith.constant 0 : i32
    %c0_i32_0 = arith.constant 0 : i32
    %c0_i32_1 = arith.constant 0 : i32
    return %c0_i32, %c0_i32_0 : i32, i32
  }
  func.func @transform_2(%arg0: i32) -> (i32, i32) {
    %c0_i32 = arith.constant 0 : i32
    %c0_i32_0 = arith.constant 0 : i32
    return %arg0, %c0_i32 : i32, i32
  }
}

</mosaic_0001>

<llo_original>
// kernel: tpu_custom_call.1
$region0: #{tpu_custom_call.1}
  #allocation0 [shape = 'u32[]', space=smem, size = 0x4, offset = 0x4, fixed_abs, tag = 'smem constant byte address 0x4 - core index']
  #allocation1 [shape = 'u32[144,128]{1,0:T(1,128)}', space=vmem, size = 0x12000, scoped, tag = 'internal scratch']
  %s0 = inlined_call_operand.hbm [shape: f32[16,128], index: 0, kind: input, shape index: {}]
  %s1 = inlined_call_operand.hbm [shape: f32[1,4], index: 1, kind: input, shape index: {}]
  %s2 = inlined_call_operand.hbm [shape: f32[16,132], index: 2, kind: output, shape index: {}]
  %s3 = sld [smem:[#allocation0]]
  $region49: #{tpu_custom_call.1} parent=0
    _
  %s5 = ssub.s32 1, %s3
  %s6 = scalar_select 0, %s5, %s3
  $region1: #{tpu_custom_call.1} parent=0
    #allocation2 [shape = 'u8[8192]{0}', space=vmem, size = 0x2000, scoped, tag = 'input window, operand 0']
    #allocation3 [shape = 's32[2]{0}', space=sflag, size = 0x8, scoped, tag = 'scoped memory for tpu_custom_call.1']
    #allocation4 [shape = 's32[2]{0}', space=sflag, size = 0x8, scoped, tag = 'scoped memory for tpu_custom_call.1']
    #allocation5 [shape = 'u8[512]{0}', space=vmem, size = 0x400, scoped, tag = 'input window, operand 1, single buffered']
    #allocation6 [shape = 's32[1]{0}', space=sflag, size = 0x4, scoped, tag = 'scoped memory for tpu_custom_call.1']
    #allocation7 [shape = 'u8[16384]{0}', space=vmem, size = 0x4000, scoped, tag = 'output window, operand 0']
    %7 = vsyncpa [#allocation3], 0
    %s8 = scalar_lea.sflag [#allocation3], 1
    %9 = vsyncpa %s8, 0
    %10 = vsyncpa [#allocation6], 0
    %11 = vsyncpa [#allocation4], 0
    %s12 = scalar_lea.sflag [#allocation4], 1
    %13 = vsyncpa %s12, 0
    loop: start=0, step=1, limit=4
    $region2: #{tpu_custom_call.1} parent=1 // loop_pre_header
      _
    $region3: #{tpu_custom_call.1} parent=1 // loop_header
      %s15 = sphi 0, %s19
      %p16 = scmp.ge.s32.totalorder %s15, 4
      %s25 = sphi 0, %s27
      %s28 = sphi 0, %s25
      %s29 = sphi 0, %s28
      %s45 = sphi 0, %s29
      %s49 = sphi 0, %s49
      %s51 = sphi 0, %s49
      %s52 = sphi 0, %s51
      %s66 = sphi 0, %s52
      %s72 = sphi 0, %s74
      %s75 = sphi 0, %s72
      %s76 = sphi 0, %s75
      %s92 = sphi 0, %s76
    $region4: #{tpu_custom_call.1} parent=1 // loop_header_branch
      %18 = sbr.rel (%p16) target = $region8
    $region5: #{tpu_custom_call.1} parent=1 // loop_body
      %s20 = ssub.s32 %s15, 1
      %s21 = ssub.s32 %s15, 2
      %s22 = sadd.s32 %s15, 1
      %s23 = ssub.s32 %s15, %s22
      %p24 = scmp.eq.s32.totalorder %s23, 0
      %s26 = sadd.s32 %s25, 1
      %s27 = scalar_select %p24, %s25, %s26
      %p30 = pneg %p24
      %p31 = scmp.eq.s32.totalorder %s15, 1
      %p32 = por %p30, %p31
      %p33 = scmp.ne.s32.totalorder %s25, %s28
      %p34 = scmp.eq.s32.totalorder %s15, 0
      %p35 = por %p33, %p34
      %p36 = scmp.ne.s32.totalorder %s25, %s28
      %p37 = scmp.eq.s32.totalorder %s20, 1
      %p38 = por %p36, %p37
      %p39 = scmp.ne.s32.totalorder %s28, %s29
      %p40 = scmp.eq.s32.totalorder %s20, 0
      %p41 = por %p39, %p40
      %p42 = scmp.ne.s32.totalorder %s28, %s29
      %p43 = scmp.eq.s32.totalorder %s21, 1
      %p44 = por %p42, %p43
      %p46 = scmp.ne.s32.totalorder %s29, %s45
      %p47 = scmp.eq.s32.totalorder %s21, 0
      %p48 = por %p46, %p47
      %s50 = sadd.s32 %s49, 1
      %p53 = scmp.eq.s32.totalorder %s15, 1
      %p54 = scmp.ne.s32.totalorder %s49, %s51
      %p55 = scmp.eq.s32.totalorder %s15, 0
      %p56 = por %p54, %p55
      %p57 = scmp.ne.s32.totalorder %s49, %s51
      %p58 = scmp.eq.s32.totalorder %s20, 1
      %p59 = por %p57, %p58
      %p60 = scmp.ne.s32.totalorder %s51, %s52
      %p61 = scmp.eq.s32.totalorder %s20, 0
      %p62 = por %p60, %p61
      %p63 = scmp.ne.s32.totalorder %s51, %s52
      %p64 = scmp.eq.s32.totalorder %s21, 1
      %p65 = por %p63, %p64
      %p67 = scmp.ne.s32.totalorder %s52, %s66
      %p68 = scmp.eq.s32.totalorder %s21, 0
      %p69 = por %p67, %p68
      %s70 = ssub.s32 %s15, %s22
      %p71 = scmp.eq.s32.totalorder %s70, 0
      %s73 = sadd.s32 %s72, 1
      %s74 = scalar_select %p71, %s72, %s73
      %p77 = pneg %p71
      %p78 = scmp.eq.s32.totalorder %s15, 1
      %p79 = por %p77, %p78
      %p80 = scmp.ne.s32.totalorder %s72, %s75
      %p81 = scmp.eq.s32.totalorder %s15, 0
      %p82 = por %p80, %p81
      %p83 = scmp.ne.s32.totalorder %s72, %s75
      %p84 = scmp.eq.s32.totalorder %s20, 1
      %p85 = por %p83, %p84
      %p86 = scmp.ne.s32.totalorder %s75, %s76
      %p87 = scmp.eq.s32.totalorder %s20, 0
      %p88 = por %p86, %p87
      %p89 = scmp.ne.s32.totalorder %s75, %s76
      %p90 = scmp.eq.s32.totalorder %s21, 1
      %p91 = por %p89, %p90
      %p93 = scmp.ne.s32.totalorder %s76, %s92
      %p94 = scmp.eq.s32.totalorder %s21, 0
      %p95 = por %p93, %p94
      %p96 = scmp.le.s32.totalorder 1, %s15
      %p97 = scmp.lt.s32.totalorder %s15, 3
      %p98 = pnand %p96, %p97
      %p99 = pneg %p98
      // Predicated region
      $region9: #{tpu_custom_call.1} parent=5 // pred_check
        _
      $region10: #{tpu_custom_call.1} parent=5 // pred_check_branch
        %101 = sbr.rel (%p98) target = $region12
      $region11: #{tpu_custom_call.1} parent=5 // pred_region
        %s102 = ssub.s32 %s15, 1
        // Predicated region
        $region13: #{tpu_custom_call.1} parent=11 // pred_check
          %p103 = pneg %p62
        $region14: #{tpu_custom_call.1} parent=11 // pred_check_branch
          %105 = sbr.rel (%p103) target = $region16
        $region15: #{tpu_custom_call.1} parent=11 // pred_region
          %s107 = ssub.s32 16, 16
          %108 = vsyncadd [#allocation6], %s107
          %s110 = sshll.u32 [#allocation5], 4
          %s111 = int_to_ptr.vmem [resolvable:$true] %s110
          %113 = dma.hbm_to_vmem [thread:$0]  %s1, 16, %s111, [#allocation6]
        $region16: #{tpu_custom_call.1} parent=11 // pred_fallthru
          _
      $region12: #{tpu_custom_call.1} parent=5 // pred_fallthru
        _
      %p114 = scmp.lt.s32.totalorder %s15, 2
      // Predicated region
      $region17: #{tpu_custom_call.1} parent=5 // pred_check
        %p115 = pneg %p114
      $region18: #{tpu_custom_call.1} parent=5 // pred_check_branch
        %117 = sbr.rel (%p115) target = $region20
      $region19: #{tpu_custom_call.1} parent=5 // pred_region
        // Predicated region
        $region21: #{tpu_custom_call.1} parent=19 // pred_check
          %p118 = pneg %p35
        $region22: #{tpu_custom_call.1} parent=19 // pred_check_branch
          %120 = sbr.rel (%p118) target = $region24
        $region23: #{tpu_custom_call.1} parent=19 // pred_region
          %s121 = sand.u32 %s25, 1
          %s122 = scalar_lea.sflag [#allocation3], %s121
          %s123 = sand.u32 %s25, 1
          %s124 = smul.addr %s123, 8
          %s125 = scalar_lea.vmem [#allocation2], %s124
          %s127 = ssub.s32 128, 128
          %128 = vsyncadd %s122, %s127
          %s129 = smul.addr %s15, 128
          %s130 = scalar_lea.hbm %s0, %s129
          %s132 = sshll.u32 %s125, 4
          %s133 = int_to_ptr.vmem [resolvable:$true] %s132
          %135 = dma.hbm_to_vmem [thread:$0]  %s130, 128, %s133, %s122
        $region24: #{tpu_custom_call.1} parent=19 // pred_fallthru
          _
      $region20: #{tpu_custom_call.1} parent=5 // pred_fallthru
        _
      %p136 = scmp.le.s32.totalorder 1, %s15
      %p137 = scmp.lt.s32.totalorder %s15, 3
      %p138 = pnand %p136, %p137
      %p139 = pneg %p138
      // Predicated region
      $region25: #{tpu_custom_call.1} parent=5 // pred_check
        _
      $region26: #{tpu_custom_call.1} parent=5 // pred_check_branch
        %141 = sbr.rel (%p138) target = $region28
      $region27: #{tpu_custom_call.1} parent=5 // pred_region
        %s142 = ssub.s32 %s15, 1
        %s143 = sand.u32 %s28, 1
        %s144 = scalar_lea.sflag [#allocation3], %s143
        %s145 = sand.u32 %s28, 1
        %s146 = smul.addr %s145, 8
        %s147 = scalar_lea.vmem [#allocation2], %s146
        // Predicated region
        $region29: #{tpu_custom_call.1} parent=27 // pred_check
          %p148 = pneg %p41
        $region30: #{tpu_custom_call.1} parent=27 // pred_check_branch
          %150 = sbr.rel (%p148) target = $region32
        $region31: #{tpu_custom_call.1} parent=27 // pred_region
          %151 = dma.done %s144, 128
        $region32: #{tpu_custom_call.1} parent=27 // pred_fallthru
          _
        // Predicated region
        $region33: #{tpu_custom_call.1} parent=27 // pred_check
          %p152 = pneg %p62
        $region34: #{tpu_custom_call.1} parent=27 // pred_check_branch
          %154 = sbr.rel (%p152) target = $region36
        $region35: #{tpu_custom_call.1} parent=27 // pred_region
          %155 = dma.done [#allocation6], 16
        $region36: #{tpu_custom_call.1} parent=27 // pred_fallthru
          _
        %s156 = sand.u32 %s28, 1
        %s157 = scalar_lea.sflag [#allocation3], %s156
        %s158 = sand.u32 %s28, 1
        %s159 = smul.addr %s158, 8
        %s160 = scalar_lea.vmem [#allocation2], %s159
        %p161 = pneg %p41
        %p162 = pneg %p38
        %p163 = pneg %p62
        %p164 = pneg %p59
        %p165 = pneg %p88
        %p166 = pneg %p85
        %s167 = sand.u32 %s75, 1
        %s168 = scalar_lea.sflag [#allocation4], %s167
        %s169 = sand.u32 %s75, 1
        %s170 = smul.addr %s169, 16
        %s171 = scalar_lea.vmem [#allocation7], %s170
        %v172 = vld [vmem:[#allocation5] sm:$0x1]
        %v174 = vlaneseq
        %v175 = vshrl.u32 %v174, 7
        %v176 = vsub.s32 0, %v175
        %v177 = vrot.slane %v172, %v176
        %v179 = vld [vmem:[%s147] sm:$0xff]
        %180 = vst [vmem:[%s171] sm:$0xff] %v179
        %vm181 = vcmask 31744
        %182 = vst.msk [vmem:[%s171 + $0x8] sm:$0xff] %vm181, %v177
        %s183 = sand.u32 %s75, 1
        %s184 = scalar_lea.sflag [#allocation4], %s183
        %s185 = sand.u32 %s75, 1
        %s186 = smul.addr %s185, 16
        %s187 = scalar_lea.vmem [#allocation7], %s186
        // Predicated region
        $region37: #{tpu_custom_call.1} parent=27 // pred_check
          %p188 = pneg %p85
        $region38: #{tpu_custom_call.1} parent=27 // pred_check_branch
          %190 = sbr.rel (%p188) target = $region40
        $region39: #{tpu_custom_call.1} parent=27 // pred_region
          %s192 = ssub.s32 256, 256
          %193 = vsyncadd %s184, %s192
          %s194 = smul.addr %s20, 2
          %s195 = smul.addr %s194, 128
          %s196 = scalar_lea.hbm %s2, %s195
          %s198 = sshll.u32 %s187, 4
          %s199 = int_to_ptr.vmem [resolvable:$true] %s198
          %201 = dma.vmem_to_hbm [thread:$0]  %s199, 256, %s196, %s184
        $region40: #{tpu_custom_call.1} parent=27 // pred_fallthru
          _
      $region28: #{tpu_custom_call.1} parent=5 // pred_fallthru
        _
      %p202 = scmp.le.s32.totalorder 2, %s15
      // Predicated region
      $region41: #{tpu_custom_call.1} parent=5 // pred_check
        %p203 = pneg %p202
      $region42: #{tpu_custom_call.1} parent=5 // pred_check_branch
        %205 = sbr.rel (%p203) target = $region44
      $region43: #{tpu_custom_call.1} parent=5 // pred_region
        %s206 = ssub.s32 %s15, 2
        // Predicated region
        $region45: #{tpu_custom_call.1} parent=43 // pred_check
          %p207 = pneg %p91
        $region46: #{tpu_custom_call.1} parent=43 // pred_check_branch
          %209 = sbr.rel (%p207) target = $region48
        $region47: #{tpu_custom_call.1} parent=43 // pred_region
          %s210 = sand.u32 %s76, 1
          %s211 = scalar_lea.sflag [#allocation4], %s210
          %s212 = sand.u32 %s76, 1
          %s213 = smul.addr %s212, 16
          %s214 = scalar_lea.vmem [#allocation7], %s213
          %215 = dma.done %s211, 256
        $region48: #{tpu_custom_call.1} parent=43 // pred_fallthru
          _
      $region44: #{tpu_custom_call.1} parent=5 // pred_fallthru
        _
    $region6: #{tpu_custom_call.1} parent=1 // loop_footer
      %s19 = sadd.s32 1, %s15
    $region7: #{tpu_custom_call.1} parent=1 // loop_footer_branch
      %14 = sbr.rel target = $region3
    $region8: #{tpu_custom_call.1} parent=1 // loop_exit
      _
    %216 = vsyncpa [#allocation3], 1
    %s217 = scalar_lea.sflag [#allocation3], 1
    %218 = vsyncpa %s217, 1
    %219 = vsyncpa [#allocation6], 1
    %220 = vsyncpa [#allocation4], 1
    %s221 = scalar_lea.sflag [#allocation4], 1
    %222 = vsyncpa %s221, 1

</llo_original>
